<compile_context>
chip_gen: v7x
topology: tpu7x:2x2x1
jax: 0.10.0
libtpu: 0.0.40
codegen_flags: <defaults>
</compile_context>

<pallas_src>
import functools
import math

import jax
import jax.numpy as jnp
from jax.experimental import pallas as pl
from jax.experimental.pallas import tpu as pltpu


_LANE = 128
_TARGET_GRID_STEPS = 4   # >= 2 so both v7x TensorCores get work


def _round_up(n, m):
    return ((n + m - 1) // m) * m


def _cdiv(a, b):
    return -(-a // b)


def _sublane(itemsize):
    # native sublane packing: f32 -> 8 rows, bf16 -> 16, int8/fp8 -> 32
    return max(8, 32 // max(1, int(itemsize)))


@functools.lru_cache(maxsize=1)
def _vmem_limit_bytes():
    """Scoped-VMEM limit for this kernel, derived from the physical capacity."""
    try:
        cap = int(pltpu.get_tpu_info().vmem_capacity_bytes)
    except Exception:
        cap = 64 * 1024 * 1024  # v7x per-TensorCore VMEM (smallest of v5e/v6e/v7x)
    # Half of physical VMEM, capped at 64 MiB: 64 MiB on v5e/v6e (128 MiB
    # physical), 32 MiB on v7x (64 MiB physical).
    return int(min(cap // 2, 64 * 1024 * 1024))


def _pipeline_budget_bytes():
    # Portion of the limit spent on the double-buffered pipeline buffers;
    # the rest is headroom for Mosaic internal scratch.
    return (_vmem_limit_bytes() * 3) // 4


def _choose_tiles(n_rows, n_cols, itemsize, extra_bytes_per_lane=0):
    """Pick (tile_rows, tile_cols) for a streaming elementwise kernel over an
    (n_rows, n_cols) slab.

    * tile dims are either the full extent or a multiple of the native
      (sublane, 128) granule, so every BlockSpec is layout-legal and ragged
      last blocks are handled by Pallas masking (no wrapper padding).
    * the double-buffered physical footprint (sublane/lane padded) of
      2x input + 2x output buffers (+ broadcast side streams) fits the
      VMEM budget.
    * the grid gets >= _TARGET_GRID_STEPS steps when the tensor is big enough,
      so ("parallel", ...) can shard across both v7x TensorCores.
    """
    sub = _sublane(itemsize)
    budget = _pipeline_budget_bytes()

    def phys_bytes(tr, tc):
        tr_p = _round_up(tr, sub)
        tc_p = _round_up(tc, _LANE)
        return (4 * tr_p * itemsize + extra_bytes_per_lane) * tc_p

    def halve(tr, tc):
        # shrink whichever dimension has more granules left
        if tc > _LANE and (tc // _LANE) >= max(1, tr // sub):
            return tr, max(_LANE, _round_up(tc // 2, _LANE))
        if tr > sub:
            return max(sub, _round_up(tr // 2, sub)), tc
        if tc > _LANE:
            return tr, max(_LANE, _round_up(tc // 2, _LANE))
        return tr, tc

    tr, tc = n_rows, n_cols
    while phys_bytes(tr, tc) > budget:
        ntr, ntc = halve(tr, tc)
        if (ntr, ntc) == (tr, tc):
            break
        tr, tc = ntr, ntc

    max_steps = _cdiv(n_rows, sub) * _cdiv(n_cols, _LANE)
    min_steps = min(_TARGET_GRID_STEPS, max_steps)
    while _cdiv(n_rows, tr) * _cdiv(n_cols, tc) < min_steps:
        ntr, ntc = halve(tr, tc)
        if (ntr, ntc) == (tr, tc):
            break
        tr, tc = ntr, ntc

    return int(tr), int(tc)


# ---------------------------------------------------------------------------
# Kernels (factors folded as compile-time constants; f32 compute, cast on store)
# ---------------------------------------------------------------------------
def _relu_kernel(x_ref, o_ref):
    o_ref[...] = jnp.maximum(x_ref[...], 0).astype(o_ref.dtype)


def _make_scalar_blend_kernel(f0, f1, f2):
    def kernel(mask_ref, x_ref, o_ref):
        m = mask_ref[0]
        x = x_ref[...].astype(jnp.float32)
        relu = jnp.maximum(x, 0.0)
        poly = (f0 * x + f1) * x + f2
        blend = relu * m + poly * (1.0 - m)          # literal torch formulation
        # mask == -1 means plain ReLU (matches the PyTorch branch even when the
        # mask is a traced scalar).
        o_ref[...] = jnp.where(m == -1.0, relu, blend).astype(o_ref.dtype)
    return kernel


def _make_pixel_kernel(f0, f1, f2):
    def kernel(mask_ref, x_ref, rmask_ref, o_ref):
        m = mask_ref[0]
        x = x_ref[...].astype(jnp.float32)
        relu = jnp.maximum(x, 0.0)
        poly = (f0 * x + f1) * x + f2
        if_relu = (m > rmask_ref[...]).astype(jnp.float32)   # (1, tc) -> bcast rows
        blend = relu * if_relu + poly * (1.0 - if_relu)
        o_ref[...] = jnp.where(m == -1.0, relu, blend).astype(o_ref.dtype)
    return kernel


# ---------------------------------------------------------------------------
# pallas_call wrappers (2-D grid: row tiles x lane tiles, ragged blocks OK)
# ---------------------------------------------------------------------------
@functools.partial(jax.jit, static_argnames=("tr", "tc"))
def _run_relu(x2d, *, tr, tc):
    R, C = x2d.shape
    grid = (pl.cdiv(R, tr), pl.cdiv(C, tc))
    return pl.pallas_call(
        _relu_kernel,
        out_shape=jax.ShapeDtypeStruct((R, C), x2d.dtype),
        grid_spec=pl.GridSpec(
            grid=grid,
            in_specs=[pl.BlockSpec((tr, tc), lambda r, c: (r, c))],
            out_specs=pl.BlockSpec((tr, tc), lambda r, c: (r, c)),
        ),
        compiler_params=pltpu.CompilerParams(
            dimension_semantics=("parallel", "parallel"),
            vmem_limit_bytes=_vmem_limit_bytes(),
        ),
    )(x2d)


@functools.partial(jax.jit, static_argnames=("f0", "f1", "f2", "tr", "tc"))
def _run_scalar_blend(x2d, mask_scalar, *, f0, f1, f2, tr, tc):
    R, C = x2d.shape
    grid = (pl.cdiv(R, tr), pl.cdiv(C, tc))
    mask_arr = jnp.asarray(mask_scalar, jnp.float32).reshape((1,))
    return pl.pallas_call(
        _make_scalar_blend_kernel(f0, f1, f2),
        out_shape=jax.ShapeDtypeStruct((R, C), x2d.dtype),
        grid_spec=pltpu.PrefetchScalarGridSpec(
            num_scalar_prefetch=1,
            grid=grid,
            in_specs=[pl.BlockSpec((tr, tc), lambda r, c, m: (r, c))],
            out_specs=pl.BlockSpec((tr, tc), lambda r, c, m: (r, c)),
        ),
        compiler_params=pltpu.CompilerParams(
            dimension_semantics=("parallel", "parallel"),
            vmem_limit_bytes=_vmem_limit_bytes(),
        ),
    )(mask_arr, x2d)


@functools.partial(jax.jit, static_argnames=("f0", "f1", "f2", "tr", "tc"))
def _run_pixel(x2d, rmask2d, mask_scalar, *, f0, f1, f2, tr, tc):
    B, D = x2d.shape
    grid = (pl.cdiv(B, tr), pl.cdiv(D, tc))
    mask_arr = jnp.asarray(mask_scalar, jnp.float32).reshape((1,))
    return pl.pallas_call(
        _make_pixel_kernel(f0, f1, f2),
        out_shape=jax.ShapeDtypeStruct((B, D), x2d.dtype),
        grid_spec=pltpu.PrefetchScalarGridSpec(
            num_scalar_prefetch=1,
            grid=grid,
            in_specs=[
                pl.BlockSpec((tr, tc), lambda b, d, m: (b, d)),
                # rand mask: indexed by the lane tile only -> reused across the
                # whole batch tile (1/B of x's read traffic).
                pl.BlockSpec((1, tc), lambda b, d, m: (0, d)),
            ],
            out_specs=pl.BlockSpec((tr, tc), lambda b, d, m: (b, d)),
        ),
        compiler_params=pltpu.CompilerParams(
            dimension_semantics=("parallel", "parallel"),
            vmem_limit_bytes=_vmem_limit_bytes(),
        ),
    )(mask_arr, x2d, rmask2d)


# ---------------------------------------------------------------------------
# Module
# ---------------------------------------------------------------------------
class FixReluPoly:
    """JAX/Pallas port of the PyTorch fix_relu_poly module."""

    def __init__(self, if_pixel, factors, rand_mask_key=None):
        if len(factors) != 3:
            raise ValueError("factors must be of length 3")
        self.if_pixel = if_pixel
        self.factors = tuple(float(f) for f in factors)   # fixed, non-trainable
        self.rand_mask = None
        self._rand_mask_shape = None
        self._rand_mask_key = (
            rand_mask_key if rand_mask_key is not None else jax.random.PRNGKey(1)
        )

    # -- helpers -------------------------------------------------------------
    @staticmethod
    def _is_static_relu(mask):
        """mask is None or (a concrete) mask == -1 -> plain relu path."""
        if mask is None:
            return True
        if isinstance(mask, (bool, int, float)):
            return mask == -1
        try:
            arr = jnp.asarray(mask)
            if arr.ndim == 0:
                return bool(arr == -1)
        except jax.errors.ConcretizationTypeError:
            # Traced scalar: cannot branch at trace time; the kernels handle
            # mask == -1 internally via a select, so falling through is safe.
            pass
        return False

    @staticmethod
    def _flatten_elementwise(x):
        """Layout for the scalar-mask / relu paths: sublane-dense for any batch."""
        n = x.size
        if n % _LANE == 0:
            return x.reshape(n // _LANE, _LANE)   # contiguous, rows are sublane-dense
        return x.reshape(x.shape[0], -1)          # fallback: (B, D), ragged lane blocks

    def _get_rand_mask(self, feature_shape):
        # Lazily create (like the PyTorch module); regenerate if the spatial
        # shape changes between calls.  Kept in f32 to match torch.rand semantics.
        shape = tuple(int(s) for s in feature_shape)
        if self.rand_mask is None or self._rand_mask_shape != shape:
            self.rand_mask = jax.random.uniform(
                self._rand_mask_key, shape, dtype=jnp.float32
            )
            self._rand_mask_shape = shape
        return self.rand_mask

    # -- forward --------------------------------------------------------------
    def __call__(self, x, mask):
        orig_shape = x.shape
        itemsize = jnp.dtype(x.dtype).itemsize
        f0, f1, f2 = self.factors

        if self._is_static_relu(mask):
            x2d = self._flatten_elementwise(x)
            tr, tc = _choose_tiles(x2d.shape[0], x2d.shape[1], itemsize)
            y2d = _run_relu(x2d, tr=tr, tc=tc)
            return y2d.reshape(orig_shape)

        if self.if_pixel:
            B = int(orig_shape[0])
            D = int(math.prod(orig_shape[1:])) if len(orig_shape) > 1 else 1
            rmask2d = self._get_rand_mask(orig_shape[1:]).reshape(1, D)
            x2d = x.reshape(B, D)
            # rand-mask side stream: 2 buffers x 8 padded sublanes x 4 B per lane
            extra = 2 * 8 * 4
            tr, tc = _choose_tiles(B, D, itemsize, extra_bytes_per_lane=extra)
            y2d = _run_pixel(x2d, rmask2d, mask, f0=f0, f1=f1, f2=f2, tr=tr, tc=tc)
            return y2d.reshape(orig_shape)

        x2d = self._flatten_elementwise(x)
        tr, tc = _choose_tiles(x2d.shape[0], x2d.shape[1], itemsize)
        y2d = _run_scalar_blend(x2d, mask, f0=f0, f1=f1, f2=f2, tr=tr, tc=tc)
        return y2d.reshape(orig_shape)

    # -- density helper ---------------------------------------------------------
    def get_relu_density(self, mask):
        if not self.if_pixel:
            raise ValueError("get_relu_density can only be called when if_pixel is True")
        if self.rand_mask is None:
            raise ValueError(
                "rand_mask is not initialized; run a forward pass with a "
                "non-relu mask first"
            )
        if_relu = jnp.asarray(mask, jnp.float32) > self.rand_mask
        total = int(self.rand_mask.size)
        relu_elems = int(jnp.sum(if_relu))   # host sync, mirrors torch .item()
        return total, relu_elems


# ---------------------------------------------------------------------------
# Plain-JAX reference for correctness checks
# ---------------------------------------------------------------------------
def _ref_forward(x, mask, factors, rand_mask, if_pixel):
    f0, f1, f2 = (jnp.float32(f) for f in factors)
    if mask is None or (isinstance(mask, (int, float)) and mask == -1):
        return jnp.maximum(x, 0)
    xf = x.astype(jnp.float32)
    relu = jnp.maximum(xf, 0.0)
    poly = (f0 * xf + f1) * xf + f2
    m = jnp.float32(mask)
    if if_pixel:
        if_relu = (m > rand_mask).astype(jnp.float32)
        y = relu * if_relu + poly * (1.0 - if_relu)
    else:
        y = relu * m + poly * (1.0 - m)
    y = jnp.where(m == -1.0, relu, y)
    return y.astype(x.dtype)


if __name__ == "__main__":
    key = jax.random.PRNGKey(0)
    kx, kmask, kx2, kx3 = jax.random.split(key, 4)

    B, C, H, W = 2, 4, 16, 16
    x = jax.random.normal(kx, (B, C, H, W), dtype=jnp.float32)
    factors = [0.1, 0.5, 0.2]
    mask_val = 0.5
    relu_ref = jnp.maximum(x, 0.0)

    # --- if_pixel=True path ---------------------------------------------------
    mod_pixel = FixReluPoly(if_pixel=True, factors=factors, rand_mask_key=kmask)
    y_pixel = mod_pixel(x, mask_val)
    jax.block_until_ready(y_pixel)
    ref_pixel = _ref_forward(x, mask_val, factors, mod_pixel.rand_mask, True)
    assert jnp.allclose(y_pixel, ref_pixel, atol=1e-6, rtol=1e-6)

    # --- if_pixel=False path ----------------------------------------------------
    mod_scalar = FixReluPoly(if_pixel=False, factors=factors)
    y_scalar = mod_scalar(x, mask_val)
    jax.block_until_ready(y_scalar)
    assert jnp.allclose(y_scalar, _ref_forward(x, mask_val, factors, None, False),
                        atol=1e-6, rtol=1e-6)

    # --- mask None / -1 (Python and concrete jnp scalar) -> plain relu ----------
    for m in (None, -1, jnp.asarray(-1.0)):
        y = mod_pixel(x, m)
        jax.block_until_ready(y)
        assert jnp.allclose(y, relu_ref, atol=1e-6)

    # --- traced mask (inside jit): -1 handled inside the kernel -----------------
    jit_scalar = jax.jit(lambda xx, mm: mod_scalar(xx, mm))
    assert jnp.allclose(jit_scalar(x, -1.0), relu_ref, atol=1e-6)
    assert jnp.allclose(jit_scalar(x, 0.25),
                        _ref_forward(x, 0.25, factors, None, False),
                        atol=1e-6, rtol=1e-6)
    jit_pixel = jax.jit(lambda xx, mm: mod_pixel(xx, mm))   # rand_mask already built
    assert jnp.allclose(jit_pixel(x, -1.0), relu_ref, atol=1e-6)
    assert jnp.allclose(jit_pixel(x, mask_val), ref_pixel, atol=1e-6, rtol=1e-6)

    # --- non-128-multiple feature size (D = 300): ragged lane blocks, no padding -
    x_odd = jax.random.normal(kx2, (2, 3, 10, 10), dtype=jnp.float32)
    y_odd = mod_pixel(x_odd, mask_val)
    jax.block_until_ready(y_odd)
    assert jnp.allclose(y_odd,
                        _ref_forward(x_odd, mask_val, factors, mod_pixel.rand_mask, True),
                        atol=1e-6, rtol=1e-6)
    assert jnp.allclose(mod_scalar(x_odd, 0.75),
                        _ref_forward(x_odd, 0.75, factors, None, False),
                        atol=1e-6, rtol=1e-6)
    assert jnp.allclose(mod_scalar(x_odd, None), jnp.maximum(x_odd, 0.0), atol=1e-6)

    # --- bf16, multi-step flattened (rows, 128) layout ---------------------------
    x_bf = jax.random.normal(kx3, (4, 8, 32, 32), dtype=jnp.bfloat16)
    y_bf = mod_scalar(x_bf, 0.25)
    jax.block_until_ready(y_bf)
    ref_bf = _ref_forward(x_bf, 0.25, factors, None, False)
    assert jnp.allclose(y_bf.astype(jnp.float32), ref_bf.astype(jnp.float32),
                        atol=1e-2, rtol=1e-2)

    # --- relu density helper -----------------------------------------------------
    total, relu_elems = mod_pixel.get_relu_density(mask_val)
    assert total == 300 and 0 <= relu_elems <= total

    print("KERNEL_OK")
</pallas_src>

<mosaic_0001>
module attributes {stable_mosaic.version = 11 : i64} {
  func.func @kernel(%arg0: i32, %arg1: i32, %arg2: memref<1xf32, #tpu.memory_space<smem>>, %arg3: memref<2x256xf32, #tpu.memory_space<vmem>>, %arg4: memref<1x256xf32, #tpu.memory_space<vmem>>, %arg5: memref<2x256xf32, #tpu.memory_space<vmem>>) attributes {dimension_semantics = [#tpu.dimension_semantics<parallel>, #tpu.dimension_semantics<parallel>], iteration_bounds = array<i64: 1, 4>, scalar_prefetch = 1 : i64, scratch_operands = 0 : i64, tpu.core_type = #tpu.core_type<tc>, window_params = [{transform_indices = @transform_0, window_bounds = array<i64: 2, 256>}, {transform_indices = @transform_1, window_bounds = array<i64: 1, 256>}, {transform_indices = @transform_2, window_bounds = array<i64: 2, 256>}]} {
    %c0 = arith.constant 0 : index
    %0 = memref.load %arg2[%c0] : memref<1xf32, #tpu.memory_space<smem>>
    %c0_0 = arith.constant 0 : index
    %c0_1 = arith.constant 0 : index
    %1 = vector.load %arg3[%c0_0, %c0_1] : memref<2x256xf32, #tpu.memory_space<vmem>>, vector<2x256xf32>
    %cst = arith.constant 0.000000e+00 : f32
    %2 = vector.broadcast %cst : f32 to vector<2x256xf32>
    %3 = arith.maximumf %1, %2 : vector<2x256xf32>
    %cst_2 = arith.constant 1.000000e-01 : f32
    %4 = vector.broadcast %cst_2 : f32 to vector<2x256xf32>
    %5 = arith.mulf %4, %1 : vector<2x256xf32>
    %cst_3 = arith.constant 5.000000e-01 : f32
    %6 = vector.broadcast %cst_3 : f32 to vector<2x256xf32>
    %7 = arith.addf %5, %6 : vector<2x256xf32>
    %8 = arith.mulf %7, %1 : vector<2x256xf32>
    %cst_4 = arith.constant 2.000000e-01 : f32
    %9 = vector.broadcast %cst_4 : f32 to vector<2x256xf32>
    %10 = arith.addf %8, %9 : vector<2x256xf32>
    %c0_5 = arith.constant 0 : index
    %c0_6 = arith.constant 0 : index
    %11 = vector.load %arg4[%c0_5, %c0_6] : memref<1x256xf32, #tpu.memory_space<vmem>>, vector<1x256xf32>
    %12 = vector.broadcast %0 : f32 to vector<1x256xf32>
    %13 = arith.cmpf ogt, %12, %11 : vector<1x256xf32>
    %14 = arith.extui %13 : vector<1x256xi1> to vector<1x256xi32>
    %15 = arith.sitofp %14 : vector<1x256xi32> to vector<1x256xf32>
    %16 = vector.broadcast %15 : vector<1x256xf32> to vector<2x256xf32>
    %17 = arith.mulf %3, %16 : vector<2x256xf32>
    %cst_7 = arith.constant 1.000000e+00 : f32
    %18 = vector.broadcast %cst_7 : f32 to vector<1x256xf32>
    %19 = arith.subf %18, %15 : vector<1x256xf32>
    %20 = vector.broadcast %19 : vector<1x256xf32> to vector<2x256xf32>
    %21 = arith.mulf %10, %20 : vector<2x256xf32>
    %22 = arith.addf %17, %21 : vector<2x256xf32>
    %cst_8 = arith.constant -1.000000e+00 : f32
    %23 = arith.cmpf oeq, %0, %cst_8 : f32
    %24 = arith.select %23, %3, %22 : vector<2x256xf32>
    %c0_9 = arith.constant 0 : index
    %c0_10 = arith.constant 0 : index
    %25 = vector.load %arg5[%c0_9, %c0_10] : memref<2x256xf32, #tpu.memory_space<vmem>>, vector<2x256xf32>
    tpu.vector_store %arg5[%c0_9, %c0_10], %24 {strides = array<i32>} : memref<2x256xf32, #tpu.memory_space<vmem>>, vector<2x256xf32>,
    return
  }
  func.func @transform_0(%arg0: i32, %arg1: i32, %arg2: memref<1xf32, #tpu.memory_space<smem>>) -> (i32, i32) {
    %c0_i32 = arith.constant 0 : i32
    return %arg0, %arg1 : i32, i32
  }
  func.func @transform_1(%arg0: i32, %arg1: i32, %arg2: memref<1xf32, #tpu.memory_space<smem>>) -> (i32, i32) {
    %c0_i32 = arith.constant 0 : i32
    %c0_i32_0 = arith.constant 0 : i32
    return %c0_i32, %arg1 : i32, i32
  }
  func.func @transform_2(%arg0: i32, %arg1: i32, %arg2: memref<1xf32, #tpu.memory_space<smem>>) -> (i32, i32) {
    %c0_i32 = arith.constant 0 : i32
    return %arg0, %arg1 : i32, i32
  }
}

</mosaic_0001>

<llo_original>
// kernel: _run_pixel.1
$region0: #{_run_pixel.1}
  #allocation0 [shape = 'u32[]', space=smem, size = 0x4, offset = 0x4, fixed_abs, tag = 'smem constant byte address 0x4 - core index']
  #allocation1 [shape = 'u32[144,128]{1,0:T(1,128)}', space=vmem, size = 0x12000, scoped, tag = 'internal scratch']
  #allocation2 [shape = 's32[1]{0}', space=sflag, size = 0x4, scoped, tag = 'scoped memory for _run_pixel.1']
  #allocation3 [shape = 'f32[1]{0:T(128)S(6)}', space=smem, size = 0x200, scoped, tag = 'prefetched SMEM operand 0']
  %s0 = inlined_call_operand.<no memory space> [shape: f32[1], index: 0, kind: input, shape index: {}]
  %s1 = inlined_call_operand.hbm [shape: f32[2,1024], index: 1, kind: input, shape index: {}]
  %s2 = inlined_call_operand.vmem [shape: f32[1,1024], index: 2, kind: input, shape index: {}]
  %s3 = inlined_call_operand.hbm [shape: f32[2,1024], index: 3, kind: output, shape index: {}]
  %s4 = sld [smem:[#allocation0]]
  $region45: #{_run_pixel.1} parent=0
    _
  %s6 = ssub.s32 1, %s4
  %s7 = scalar_select 0, %s6, %s4
  %8 = sst [smem:[#allocation3]] %s0
  $region1: #{_run_pixel.1} parent=0
    #allocation4 [shape = 'u8[4096]{0}', space=vmem, size = 0x1000, scoped, tag = 'input window, operand 1']
    #allocation5 [shape = 's32[2]{0}', space=sflag, size = 0x8, scoped, tag = 'scoped memory for _run_pixel.1']
    #allocation6 [shape = 's32[2]{0}', space=sflag, size = 0x8, scoped, tag = 'scoped memory for _run_pixel.1']
    #allocation7 [shape = 'u8[4096]{0}', space=vmem, size = 0x1000, scoped, tag = 'output window, operand 0']
    %9 = vsyncpa [#allocation5], 0
    %s10 = scalar_lea.sflag [#allocation5], 1
    %11 = vsyncpa %s10, 0
    %12 = vsyncpa [#allocation6], 0
    %s13 = scalar_lea.sflag [#allocation6], 1
    %14 = vsyncpa %s13, 0
    loop: start=0, step=1, limit=6
    $region2: #{_run_pixel.1} parent=1 // loop_pre_header
      _
    $region3: #{_run_pixel.1} parent=1 // loop_header
      %s16 = sphi 0, %s20
      %p17 = scmp.ge.s32.totalorder %s16, 6
      %s23 = sphi 0, %s35
      %s24 = sphi 0, %s31
      %s25 = sphi 0, %s23
      %s26 = sphi 0, %s24
      %s27 = sphi 0, %s25
      %s28 = sphi 0, %s26
      %s40 = sphi 0, %s42
      %s43 = sphi 0, %s40
      %s44 = sphi 0, %s43
      %s60 = sphi 0, %s44
      %s66 = sphi 0, %s68
      %s69 = sphi 0, %s66
      %s70 = sphi 0, %s69
      %s86 = sphi 0, %s70
      %s94 = sphi 0, %s96
      %s97 = sphi 0, %s94
      %s98 = sphi 0, %s97
      %s114 = sphi 0, %s98
    $region4: #{_run_pixel.1} parent=1 // loop_header_branch
      %19 = sbr.rel (%p17) target = $region8
    $region5: #{_run_pixel.1} parent=1 // loop_body
      %s21 = ssub.s32 %s16, 1
      %s22 = ssub.s32 %s16, 2
      %s29 = sadd.s32 1, %s24
      %p30 = scmp.ge.s32.totalorder %s29, 4
      %s31 = scalar_select %p30, 0, %s29
      %s32 = sadd.s32 1, %s23
      %s33 = scalar_select %p30, %s32, %s23
      %p34 = scmp.ge.s32.totalorder %s33, 1
      %s35 = scalar_select %p34, 0, %s33
      %s36 = ssub.s32 %s23, %s35
      %s37 = ssub.s32 %s24, %s31
      %s38 = sor.u32 %s36, %s37
      %p39 = scmp.eq.s32.totalorder %s38, 0
      %s41 = sadd.s32 %s40, 1
      %s42 = scalar_select %p39, %s40, %s41
      %p45 = pneg %p39
      %p46 = scmp.eq.s32.totalorder %s16, 3
      %p47 = por %p45, %p46
      %p48 = scmp.ne.s32.totalorder %s40, %s43
      %p49 = scmp.eq.s32.totalorder %s16, 0
      %p50 = por %p48, %p49
      %p51 = scmp.ne.s32.totalorder %s40, %s43
      %p52 = scmp.eq.s32.totalorder %s21, 3
      %p53 = por %p51, %p52
      %p54 = scmp.ne.s32.totalorder %s43, %s44
      %p55 = scmp.eq.s32.totalorder %s21, 0
      %p56 = por %p54, %p55
      %p57 = scmp.ne.s32.totalorder %s43, %s44
      %p58 = scmp.eq.s32.totalorder %s22, 3
      %p59 = por %p57, %p58
      %p61 = scmp.ne.s32.totalorder %s44, %s60
      %p62 = scmp.eq.s32.totalorder %s22, 0
      %p63 = por %p61, %p62
      %s64 = ssub.s32 %s24, %s31
      %p65 = scmp.eq.s32.totalorder %s64, 0
      %s67 = sadd.s32 %s66, 1
      %s68 = scalar_select %p65, %s66, %s67
      %p71 = pneg %p65
      %p72 = scmp.eq.s32.totalorder %s16, 3
      %p73 = por %p71, %p72
      %p74 = scmp.ne.s32.totalorder %s66, %s69
      %p75 = scmp.eq.s32.totalorder %s16, 0
      %p76 = por %p74, %p75
      %p77 = scmp.ne.s32.totalorder %s66, %s69
      %p78 = scmp.eq.s32.totalorder %s21, 3
      %p79 = por %p77, %p78
      %p80 = scmp.ne.s32.totalorder %s69, %s70
      %p81 = scmp.eq.s32.totalorder %s21, 0
      %p82 = por %p80, %p81
      %p83 = scmp.ne.s32.totalorder %s69, %s70
      %p84 = scmp.eq.s32.totalorder %s22, 3
      %p85 = por %p83, %p84
      %p87 = scmp.ne.s32.totalorder %s70, %s86
      %p88 = scmp.eq.s32.totalorder %s22, 0
      %p89 = por %p87, %p88
      %s90 = ssub.s32 %s23, %s35
      %s91 = ssub.s32 %s24, %s31
      %s92 = sor.u32 %s90, %s91
      %p93 = scmp.eq.s32.totalorder %s92, 0
      %s95 = sadd.s32 %s94, 1
      %s96 = scalar_select %p93, %s94, %s95
      %p99 = pneg %p93
      %p100 = scmp.eq.s32.totalorder %s16, 3
      %p101 = por %p99, %p100
      %p102 = scmp.ne.s32.totalorder %s94, %s97
      %p103 = scmp.eq.s32.totalorder %s16, 0
      %p104 = por %p102, %p103
      %p105 = scmp.ne.s32.totalorder %s94, %s97
      %p106 = scmp.eq.s32.totalorder %s21, 3
      %p107 = por %p105, %p106
      %p108 = scmp.ne.s32.totalorder %s97, %s98
      %p109 = scmp.eq.s32.totalorder %s21, 0
      %p110 = por %p108, %p109
      %p111 = scmp.ne.s32.totalorder %s97, %s98
      %p112 = scmp.eq.s32.totalorder %s22, 3
      %p113 = por %p111, %p112
      %p115 = scmp.ne.s32.totalorder %s98, %s114
      %p116 = scmp.eq.s32.totalorder %s22, 0
      %p117 = por %p115, %p116
      %p118 = scmp.le.s32.totalorder 1, %s16
      %p119 = scmp.lt.s32.totalorder %s16, 5
      %p120 = pnand %p118, %p119
      %p121 = pneg %p120
      // Predicated region
      $region9: #{_run_pixel.1} parent=5 // pred_check
        _
      $region10: #{_run_pixel.1} parent=5 // pred_check_branch
        %123 = sbr.rel (%p120) target = $region12
      $region11: #{_run_pixel.1} parent=5 // pred_region
        %s124 = ssub.s32 %s16, 1
      $region12: #{_run_pixel.1} parent=5 // pred_fallthru
        _
      %p125 = scmp.lt.s32.totalorder %s16, 4
      // Predicated region
      $region13: #{_run_pixel.1} parent=5 // pred_check
        %p126 = pneg %p125
      $region14: #{_run_pixel.1} parent=5 // pred_check_branch
        %128 = sbr.rel (%p126) target = $region16
      $region15: #{_run_pixel.1} parent=5 // pred_region
        // Predicated region
        $region17: #{_run_pixel.1} parent=15 // pred_check
          %p129 = pneg %p50
        $region18: #{_run_pixel.1} parent=15 // pred_check_branch
          %131 = sbr.rel (%p129) target = $region20
        $region19: #{_run_pixel.1} parent=15 // pred_region
          %s132 = sand.u32 %s40, 1
          %s133 = scalar_lea.sflag [#allocation5], %s132
          %s134 = sand.u32 %s40, 1
          %s135 = smul.addr %s134, 4
          %s136 = scalar_lea.vmem [#allocation4], %s135
          %s137 = smul.u32 2, %s24
          %s139 = ssub.s32 64, 64
          %140 = vsyncadd %s133, %s139
          %s141 = smul.addr %s23, 8
          %s142 = sadd.s32 %s137, %s141
          %s143 = smul.addr %s142, 32
          %s144 = scalar_lea.hbm %s1, %s143
          %s146 = sshll.u32 %s136, 4
          %s147 = int_to_ptr.vmem [resolvable:$true] %s146
          %149 = dma.hbm_to_vmem [thread:$0]  %s144, 64, %s147, %s133
        $region20: #{_run_pixel.1} parent=15 // pred_fallthru
          _
        // Predicated region
        $region21: #{_run_pixel.1} parent=15 // pred_check
          %p150 = pneg %p76
        $region22: #{_run_pixel.1} parent=15 // pred_check_branch
          %152 = sbr.rel (%p150) target = $region24
        $region23: #{_run_pixel.1} parent=15 // pred_region
          %s153 = smul.u32 2, %s24
          %p154 = scmp.lt.s32.totalorder %s153, 7
          %s155 = scalar_select %p154, %s153, 7
          %s156 = scalar_lea.vmem %s2, %s155
          %s157 = smul.u32 2, %s24
        $region24: #{_run_pixel.1} parent=15 // pred_fallthru
          _
      $region16: #{_run_pixel.1} parent=5 // pred_fallthru
        _
      %p158 = scmp.le.s32.totalorder 1, %s16
      %p159 = scmp.lt.s32.totalorder %s16, 5
      %p160 = pnand %p158, %p159
      %p161 = pneg %p160
      // Predicated region
      $region25: #{_run_pixel.1} parent=5 // pred_check
        _
      $region26: #{_run_pixel.1} parent=5 // pred_check_branch
        %163 = sbr.rel (%p160) target = $region28
      $region27: #{_run_pixel.1} parent=5 // pred_region
        %s164 = ssub.s32 %s16, 1
        %s165 = sand.u32 %s43, 1
        %s166 = scalar_lea.sflag [#allocation5], %s165
        %s167 = sand.u32 %s43, 1
        %s168 = smul.addr %s167, 4
        %s169 = scalar_lea.vmem [#allocation4], %s168
        // Predicated region
        $region29: #{_run_pixel.1} parent=27 // pred_check
          %p170 = pneg %p56
        $region30: #{_run_pixel.1} parent=27 // pred_check_branch
          %172 = sbr.rel (%p170) target = $region32
        $region31: #{_run_pixel.1} parent=27 // pred_region
          %173 = dma.done %s166, 64
        $region32: #{_run_pixel.1} parent=27 // pred_fallthru
          _
        %s174 = sand.u32 %s43, 1
        %s175 = scalar_lea.sflag [#allocation5], %s174
        %s176 = sand.u32 %s43, 1
        %s177 = smul.addr %s176, 4
        %s178 = scalar_lea.vmem [#allocation4], %s177
        %p179 = pneg %p56
        %p180 = pneg %p53
        %s181 = smul.u32 2, %s26
        %p182 = scmp.lt.s32.totalorder %s181, 7
        %s183 = scalar_select %p182, %s181, 7
        %s184 = scalar_lea.vmem %s2, %s183
        %p185 = pneg %p82
        %p186 = pneg %p79
        %p187 = pneg %p110
        %p188 = pneg %p107
        %s189 = sand.u32 %s97, 1
        %s190 = scalar_lea.sflag [#allocation6], %s189
        %s191 = sand.u32 %s97, 1
        %s192 = smul.addr %s191, 4
        %s193 = scalar_lea.vmem [#allocation7], %s192
        %s194 = smul.u32 2, %s26
        %s195 = smul.u32 2, %s26
        %p196 = scmp.lt.s32.totalorder %s195, 7
        %s197 = scalar_select %p196, %s195, 7
        %s198 = scalar_lea.vmem %s2, %s197
        %s199 = smul.u32 2, %s26
        %s200 = smul.u32 2, %s26
        %s201 = sld [smem:[#allocation3]]
        %v202 = vld [vmem:[%s169] sm:$0xf]
        %v203 = vmax.f32 %v202, 0.0
        %v204 = vmul.f32 %v202, 0.1
        %v205 = vadd.f32 %v204, 0.5
        %v206 = vmul.f32 %v205, %v202
        %v207 = vadd.f32 %v206, 0.2
        %v208 = vld [vmem:[%s198] sm:$0x3]
        %v209 = vstv %s201
        %vm210 = vcmp.gt.f32.partialorder %v209, %v208
        %v211 = vsel %vm210, 1, 0
        %v212 = vcvt.s32.f32 %v211
        %v214 = vlaneseq
        %v215 = vshrl.u32 %v214, 7
        %v216 = vsub.s32 0, %v215
        %v217 = vrot.slane %v212, %v216
        %v218 = vlaneseq
        %v219 = vshrl.u32 %v218, 7
        %v220 = vsub.s32 1, %v219
        %v221 = vrot.slane %v212, %v220
        %v222 = vcombine.low %v217, %v221
        %v224 = vunpack.c.l.s4 1983009808
        %v225 = vunpack.c.0.s8 %v224
        %v226 = vlaneseq
        %v227 = vshrl.u32 %v226, 7
        %v228 = vsub.s32 %v225, %v227
        %v229 = vrot.slane %v222, %v228
        %v231 = vmul.f32 %v203, %v229
        %v232 = vsub.f32 1.0, %v212
        %v234 = vlaneseq
        %v235 = vshrl.u32 %v234, 7
        %v236 = vsub.s32 0, %v235
        %v237 = vrot.slane %v232, %v236
        %v238 = vlaneseq
        %v239 = vshrl.u32 %v238, 7
        %v240 = vsub.s32 1, %v239
        %v241 = vrot.slane %v232, %v240
        %v242 = vcombine.low %v237, %v241
        %v244 = vunpack.c.l.s4 1983009808
        %v245 = vunpack.c.0.s8 %v244
        %v246 = vlaneseq
        %v247 = vshrl.u32 %v246, 7
        %v248 = vsub.s32 %v245, %v247
        %v249 = vrot.slane %v242, %v248
        %v251 = vmul.f32 %v207, %v249
        %v252 = vadd.f32 %v231, %v251
        %p253 = scmp.eq.f32.partialorder %s201, -1.0
        %s254 = scalar_select %p253, 1, 0
        %v255 = vstv %s254
        %vm256 = vcmp.eq.s32.totalorder %v255, 1
        %v257 = vsel %vm256, %v203, %v252
        %258 = vst [vmem:[%s193] sm:$0xf] %v257
        %s259 = sand.u32 %s97, 1
        %s260 = scalar_lea.sflag [#allocation6], %s259
        %s261 = sand.u32 %s97, 1
        %s262 = smul.addr %s261, 4
        %s263 = scalar_lea.vmem [#allocation7], %s262
        // Predicated region
        $region33: #{_run_pixel.1} parent=27 // pred_check
          %p264 = pneg %p107
        $region34: #{_run_pixel.1} parent=27 // pred_check_branch
          %266 = sbr.rel (%p264) target = $region36
        $region35: #{_run_pixel.1} parent=27 // pred_region
          %s267 = smul.u32 2, %s26
          %s269 = ssub.s32 64, 64
          %270 = vsyncadd %s260, %s269
          %s271 = smul.addr %s25, 8
          %s272 = sadd.s32 %s267, %s271
          %s273 = smul.addr %s272, 32
          %s274 = scalar_lea.hbm %s3, %s273
          %s276 = sshll.u32 %s263, 4
          %s277 = int_to_ptr.vmem [resolvable:$true] %s276
          %279 = dma.vmem_to_hbm [thread:$0]  %s277, 64, %s274, %s260
        $region36: #{_run_pixel.1} parent=27 // pred_fallthru
          _
      $region28: #{_run_pixel.1} parent=5 // pred_fallthru
        _
      %p280 = scmp.le.s32.totalorder 2, %s16
      // Predicated region
      $region37: #{_run_pixel.1} parent=5 // pred_check
        %p281 = pneg %p280
      $region38: #{_run_pixel.1} parent=5 // pred_check_branch
        %283 = sbr.rel (%p281) target = $region40
      $region39: #{_run_pixel.1} parent=5 // pred_region
        %s284 = ssub.s32 %s16, 2
        // Predicated region
        $region41: #{_run_pixel.1} parent=39 // pred_check
          %p285 = pneg %p113
        $region42: #{_run_pixel.1} parent=39 // pred_check_branch
          %287 = sbr.rel (%p285) target = $region44
        $region43: #{_run_pixel.1} parent=39 // pred_region
          %s288 = sand.u32 %s98, 1
          %s289 = scalar_lea.sflag [#allocation6], %s288
          %s290 = sand.u32 %s98, 1
          %s291 = smul.addr %s290, 4
          %s292 = scalar_lea.vmem [#allocation7], %s291
          %293 = dma.done %s289, 64
        $region44: #{_run_pixel.1} parent=39 // pred_fallthru
          _
      $region40: #{_run_pixel.1} parent=5 // pred_fallthru
        _
    $region6: #{_run_pixel.1} parent=1 // loop_footer
      %s20 = sadd.s32 1, %s16
    $region7: #{_run_pixel.1} parent=1 // loop_footer_branch
      %15 = sbr.rel target = $region3
    $region8: #{_run_pixel.1} parent=1 // loop_exit
      _
    %294 = vsyncpa [#allocation5], 1
    %s295 = scalar_lea.sflag [#allocation5], 1
    %296 = vsyncpa %s295, 1
    %297 = vsyncpa [#allocation6], 1
    %s298 = scalar_lea.sflag [#allocation6], 1
    %299 = vsyncpa %s298, 1

</llo_original>
